<compile_context>
chip_gen: v7x
topology: tpu7x:2x2x1
jax: 0.10.0
libtpu: 0.0.40
codegen_flags: <defaults>
</compile_context>

<pallas_src>
import functools

import jax
import jax.numpy as jnp
from jax.experimental import pallas as pl
from jax.experimental.pallas import tpu as pltpu

NEG_SLOPE = 0.01  # nn.LeakyReLU default
LANE = 128
SUBLANE = 8


def _ceil_to(x, m):
    return ((x + m - 1) // m) * m


def _leaky(x):
    return jnp.where(x >= 0, x, NEG_SLOPE * x)


# ---------------------------------------------------------------------------
# Fused kernels.
#   cp_ref (SMEM, f32, (C, K+1)): row c = [conv_w[c, 0..K-1], conv_b[c]]
#   x_ref  (VMEM, f32, (Bp, Lp)): zero-padded input rows
#   w*_ref (VMEM, bf16)         : FC weights, flatten-permutation folded into rows,
#                                 per-channel row blocks of t_pad, lane-dense columns
#   b*_ref (VMEM, f32, (1, .))  : concatenated lane-dense bias row(s)
# ---------------------------------------------------------------------------
def _conv_then_fc(x, cp_ref, w_ref, channels, ksize, t_pad):
    """leaky(conv1d(x)) per channel (VPU), immediately contracted against the
    matching per-channel FC weight row-block (MXU).  Returns f32 (Bp, Dout_p)."""
    acc = jnp.zeros((x.shape[0], w_ref.shape[1]), jnp.float32)
    for c in range(channels):
        z = x[:, 0:t_pad] * cp_ref[c, 0]
        for k in range(1, ksize):
            z = z + x[:, k:k + t_pad] * cp_ref[c, k]
        # Positions t >= L_out are garbage but hit all-zero weight rows -> inert.
        f_c = _leaky(z + cp_ref[c, ksize]).astype(w_ref.dtype)
        acc = acc + jnp.dot(
            f_c, w_ref[pl.ds(c * t_pad, t_pad), :], preferred_element_type=jnp.float32
        )
    return acc


def _default_kernel(cp_ref, x_ref, w3_ref, b3_ref, out_ref, *, channels, ksize, t_pad):
    x = x_ref[...]
    acc = _conv_then_fc(x, cp_ref, w3_ref, channels, ksize, t_pad)
    out_ref[...] = _leaky(acc + b3_ref[...])


def _hidden_kernel(cp_ref, x_ref, w1_ref, w2_ref, b_ref, out_ref, *, channels, ksize, t_pad):
    x = x_ref[...]
    b = b_ref[...]                      # (1, Hp + Op) : [fc1_b | fc2_b]
    hp = w1_ref.shape[1]
    acc = _conv_then_fc(x, cp_ref, w1_ref, channels, ksize, t_pad)
    h = _leaky(acc + b[:, :hp]).astype(w2_ref.dtype)
    out_ref[...] = _leaky(
        jnp.dot(h, w2_ref[...], preferred_element_type=jnp.float32) + b[:, hp:]
    )


# ---------------------------------------------------------------------------
# One-time parameter preparation (pure JAX, runs once):
#   - conv scalars packed into one SMEM table,
#   - FC weights pre-transposed, flatten permutation folded into their rows,
#     split into per-channel blocks padded to t_pad rows, columns padded to 128,
#     cast to bf16,
#   - per-path bias rows concatenated into a single lane-dense f32 row.
# ---------------------------------------------------------------------------
def prepare_params(params, seq_len=150, weight_dtype=jnp.bfloat16):
    conv_w = params["conv_w"].astype(jnp.float32)   # (C, K)
    conv_b = params["conv_b"].astype(jnp.float32)   # (C,)
    channels, ksize = conv_w.shape
    l_out = seq_len - (ksize - 1)
    hidden = params["fc1_w"].shape[0]

    t_pad = _ceil_to(max(l_out, 32), 32)            # contraction block per channel (mult of 32)
    hp = _ceil_to(hidden, LANE)
    op = _ceil_to(4, LANE)

    # Conv scalars -> one small SMEM table: row c = [w[c, :], b[c]]
    cp = jnp.concatenate([conv_w, conv_b[:, None]], axis=1)         # (C, K+1) f32

    def fc_blocks(w, dout_p):
        # w: (Dout, C*l_out); torch flatten is c-major: column index = c*l_out + t.
        dout = w.shape[0]
        wt = w.astype(jnp.float32).T.reshape(channels, l_out, dout)  # (C, l_out, Dout)
        blk = jnp.zeros((channels, t_pad, dout_p), jnp.float32)
        blk = blk.at[:, :l_out, :dout].set(wt)                       # zero rows for t >= l_out
        return blk.reshape(channels * t_pad, dout_p).astype(weight_dtype)

    def pad2(w, rows, cols):
        out = jnp.zeros((rows, cols), jnp.float32)
        out = out.at[: w.shape[0], : w.shape[1]].set(w.astype(jnp.float32))
        return out.astype(weight_dtype)

    def pad_row(v, cols):
        return jnp.zeros((1, cols), jnp.float32).at[0, : v.shape[0]].set(v.astype(jnp.float32))

    return {
        "cp": cp,                                                # (C, K+1)      f32, SMEM
        "w1": fc_blocks(params["fc1_w"], hp),                    # (C*t_pad, Hp) bf16
        "w3": fc_blocks(params["fc3_w"], op),                    # (C*t_pad, Op) bf16
        "w2": pad2(params["fc2_w"].T, hp, op),                   # (Hp, Op)      bf16
        "b_default": pad_row(params["fc3_b"], op),               # (1, Op)       f32
        "b_hidden": jnp.concatenate(
            [pad_row(params["fc1_b"], hp), pad_row(params["fc2_b"], op)], axis=1
        ),                                                       # (1, Hp+Op)    f32
    }


# ---------------------------------------------------------------------------
# Forward wrapper: pad input once, single pallas_call, slice real outputs.
# ---------------------------------------------------------------------------
@functools.partial(jax.jit, static_argnames="hidden_full_layer")
def convnet_forward(x, prep, hidden_full_layer=False):
    # x: (B, 1, L) NCL float32
    B, _, L = x.shape
    channels = prep["cp"].shape[0]
    ksize = prep["cp"].shape[1] - 1
    t_pad = prep["w1"].shape[0] // channels
    hp = prep["w1"].shape[1]
    op = prep["w3"].shape[1]
    l_pad = _ceil_to(max(L, t_pad + ksize - 1), LANE)
    bp = _ceil_to(max(B, SUBLANE), SUBLANE)

    x2d = jnp.zeros((bp, l_pad), jnp.float32).at[:B, :L].set(x[:, 0, :].astype(jnp.float32))

    vmem = functools.partial(pl.BlockSpec, memory_space=pltpu.MemorySpace.VMEM)
    smem = functools.partial(pl.BlockSpec, memory_space=pltpu.MemorySpace.SMEM)

    if hidden_full_layer:
        kernel = functools.partial(
            _hidden_kernel, channels=channels, ksize=ksize, t_pad=t_pad
        )
        args = (prep["cp"], x2d, prep["w1"], prep["w2"], prep["b_hidden"])
        flops = 2 * bp * (channels * t_pad * ksize + channels * t_pad * hp + hp * op)
    else:
        kernel = functools.partial(
            _default_kernel, channels=channels, ksize=ksize, t_pad=t_pad
        )
        args = (prep["cp"], x2d, prep["w3"], prep["b_default"])
        flops = 2 * bp * (channels * t_pad * ksize + channels * t_pad * op)

    bytes_accessed = sum(a.size * a.dtype.itemsize for a in args) + bp * op * 4
    cost = pl.CostEstimate(flops=flops, transcendentals=0, bytes_accessed=bytes_accessed)

    out = pl.pallas_call(
        kernel,
        out_shape=jax.ShapeDtypeStruct((bp, op), jnp.float32),
        in_specs=[smem()] + [vmem()] * (len(args) - 1),
        out_specs=vmem(),
        cost_estimate=cost,
    )(*args)
    return out[:B, :4]


# ---------------------------------------------------------------------------
# Pure-JAX f32 reference (matches the PyTorch module)
# ---------------------------------------------------------------------------
def ref_forward(x, params, hidden_full_layer=False):
    x2d = x[:, 0, :]
    C, K = params["conv_w"].shape
    L_out = x2d.shape[1] - (K - 1)
    conv = jnp.stack(
        [
            sum(params["conv_w"][c, k] * x2d[:, k:k + L_out] for k in range(K))
            + params["conv_b"][c]
            for c in range(C)
        ],
        axis=1,
    )  # (B, C, L_out)
    flat = _leaky(conv).reshape(x.shape[0], C * L_out)

    def lin(h, w, b):
        return _leaky(h @ w.T + b)

    if hidden_full_layer:
        h = lin(flat, params["fc1_w"], params["fc1_b"])
        return lin(h, params["fc2_w"], params["fc2_b"])
    return lin(flat, params["fc3_w"], params["fc3_b"])


# ---------------------------------------------------------------------------
def init_params(key, channels=4, kernel_size=5, size_hidden_layer=50, seq_len=150):
    conv_out_size = channels * (seq_len - (kernel_size - 1))  # stride 1
    ks = jax.random.split(key, 8)

    def u(k, shape, fan_in):
        bound = 1.0 / jnp.sqrt(fan_in)
        return jax.random.uniform(k, shape, jnp.float32, -bound, bound)

    return {
        "conv_w": u(ks[0], (channels, kernel_size), kernel_size),
        "conv_b": u(ks[1], (channels,), kernel_size),
        "fc1_w": u(ks[2], (size_hidden_layer, conv_out_size), conv_out_size),
        "fc1_b": u(ks[3], (size_hidden_layer,), conv_out_size),
        "fc2_w": u(ks[4], (4, size_hidden_layer), size_hidden_layer),
        "fc2_b": u(ks[5], (4,), size_hidden_layer),
        "fc3_w": u(ks[6], (4, conv_out_size), conv_out_size),
        "fc3_b": u(ks[7], (4,), conv_out_size),
    }


if __name__ == "__main__":
    key = jax.random.PRNGKey(0)
    k_x, k_p = jax.random.split(key)

    B, SEQ = 2, 150  # module hard-codes sequence length 150 via conv_out_size
    x = jax.random.normal(k_x, (B, 1, SEQ), jnp.float32)
    params = init_params(k_p)
    prep = prepare_params(params, seq_len=SEQ)

    # default path: conv -> leaky -> flatten -> fc3 -> leaky
    out_default = jax.block_until_ready(convnet_forward(x, prep, hidden_full_layer=False))
    # hidden path: conv -> leaky -> flatten -> fc1 -> leaky -> fc2 -> leaky
    out_hidden = jax.block_until_ready(convnet_forward(x, prep, hidden_full_layer=True))

    ref_default = ref_forward(x, params, hidden_full_layer=False)
    ref_hidden = ref_forward(x, params, hidden_full_layer=True)

    assert out_default.shape == (B, 4) and out_hidden.shape == (B, 4)
    # bf16 weights/activations at the MXU -> tolerance loosened vs the pure-f32 version.
    assert jnp.allclose(out_default, ref_default, atol=2e-2, rtol=2e-2)
    assert jnp.allclose(out_hidden, ref_hidden, atol=2e-2, rtol=2e-2)

    print("KERNEL_OK")
</pallas_src>

<mosaic_0001>
module attributes {stable_mosaic.version = 11 : i64} {
  func.func @_default_kernel(%arg0: memref<4x6xf32, #tpu.memory_space<smem>>, %arg1: memref<8x256xf32, #tpu.memory_space<vmem>>, %arg2: memref<640x128xbf16, #tpu.memory_space<vmem>>, %arg3: memref<1x128xf32, #tpu.memory_space<vmem>>, %arg4: memref<8x128xf32, #tpu.memory_space<vmem>>) attributes {dimension_semantics = [], scalar_prefetch = 0 : i64, scratch_operands = 0 : i64, tpu.core_type = #tpu.core_type<tc>} {
    %c0 = arith.constant 0 : index
    %c0_0 = arith.constant 0 : index
    %0 = vector.load %arg1[%c0, %c0_0] : memref<8x256xf32, #tpu.memory_space<vmem>>, vector<8x256xf32>
    %cst = arith.constant 0.000000e+00 : f32
    %1 = vector.broadcast %cst : f32 to vector<8x128xf32>
    %2 = vector.extract_strided_slice %0 {offsets = [0, 0], sizes = [8, 160], strides = [1, 1]} : vector<8x256xf32> to vector<8x160xf32>
    %c0_1 = arith.constant 0 : index
    %c0_2 = arith.constant 0 : index
    %3 = memref.load %arg0[%c0_1, %c0_2] : memref<4x6xf32, #tpu.memory_space<smem>>
    %4 = vector.broadcast %3 : f32 to vector<8x160xf32>
    %5 = arith.mulf %2, %4 : vector<8x160xf32>
    %6 = vector.extract_strided_slice %0 {offsets = [0, 1], sizes = [8, 160], strides = [1, 1]} : vector<8x256xf32> to vector<8x160xf32>
    %c0_3 = arith.constant 0 : index
    %c1 = arith.constant 1 : index
    %7 = memref.load %arg0[%c0_3, %c1] : memref<4x6xf32, #tpu.memory_space<smem>>
    %8 = vector.broadcast %7 : f32 to vector<8x160xf32>
    %9 = arith.mulf %6, %8 : vector<8x160xf32>
    %10 = arith.addf %5, %9 : vector<8x160xf32>
    %11 = vector.extract_strided_slice %0 {offsets = [0, 2], sizes = [8, 160], strides = [1, 1]} : vector<8x256xf32> to vector<8x160xf32>
    %c0_4 = arith.constant 0 : index
    %c2 = arith.constant 2 : index
    %12 = memref.load %arg0[%c0_4, %c2] : memref<4x6xf32, #tpu.memory_space<smem>>
    %13 = vector.broadcast %12 : f32 to vector<8x160xf32>
    %14 = arith.mulf %11, %13 : vector<8x160xf32>
    %15 = arith.addf %10, %14 : vector<8x160xf32>
    %16 = vector.extract_strided_slice %0 {offsets = [0, 3], sizes = [8, 160], strides = [1, 1]} : vector<8x256xf32> to vector<8x160xf32>
    %c0_5 = arith.constant 0 : index
    %c3 = arith.constant 3 : index
    %17 = memref.load %arg0[%c0_5, %c3] : memref<4x6xf32, #tpu.memory_space<smem>>
    %18 = vector.broadcast %17 : f32 to vector<8x160xf32>
    %19 = arith.mulf %16, %18 : vector<8x160xf32>
    %20 = arith.addf %15, %19 : vector<8x160xf32>
    %21 = vector.extract_strided_slice %0 {offsets = [0, 4], sizes = [8, 160], strides = [1, 1]} : vector<8x256xf32> to vector<8x160xf32>
    %c0_6 = arith.constant 0 : index
    %c4 = arith.constant 4 : index
    %22 = memref.load %arg0[%c0_6, %c4] : memref<4x6xf32, #tpu.memory_space<smem>>
    %23 = vector.broadcast %22 : f32 to vector<8x160xf32>
    %24 = arith.mulf %21, %23 : vector<8x160xf32>
    %25 = arith.addf %20, %24 : vector<8x160xf32>
    %c0_7 = arith.constant 0 : index
    %c5 = arith.constant 5 : index
    %26 = memref.load %arg0[%c0_7, %c5] : memref<4x6xf32, #tpu.memory_space<smem>>
    %27 = vector.broadcast %26 : f32 to vector<8x160xf32>
    %28 = arith.addf %25, %27 : vector<8x160xf32>
    %cst_8 = arith.constant 0.000000e+00 : f32
    %29 = vector.broadcast %cst_8 : f32 to vector<8x160xf32>
    %30 = arith.cmpf oge, %28, %29 : vector<8x160xf32>
    %cst_9 = arith.constant 0.00999999977 : f32
    %31 = vector.broadcast %cst_9 : f32 to vector<8x160xf32>
    %32 = arith.mulf %31, %28 : vector<8x160xf32>
    %33 = arith.select %30, %28, %32 : vector<8x160xi1>, vector<8x160xf32>
    %34 = arith.truncf %33 : vector<8x160xf32> to vector<8x160xbf16>
    %c0_10 = arith.constant 0 : index
    %c0_11 = arith.constant 0 : index
    %35 = vector.load %arg2[%c0_10, %c0_11] : memref<640x128xbf16, #tpu.memory_space<vmem>>, vector<160x128xbf16>
    %cst_12 = arith.constant dense<0.000000e+00> : vector<8x128xf32>
    %36 = tpu.matmul %34, %35, %cst_12 {dimension_numbers = #tpu.dot_dimension_numbers<[1], [0], [0], [1], [0, 0, 1, 1], [], []>} : vector<8x160xbf16>, vector<160x128xbf16>, vector<8x128xf32> -> vector<8x128xf32>
    %37 = arith.addf %1, %36 : vector<8x128xf32>
    %38 = vector.extract_strided_slice %0 {offsets = [0, 0], sizes = [8, 160], strides = [1, 1]} : vector<8x256xf32> to vector<8x160xf32>
    %c1_13 = arith.constant 1 : index
    %c0_14 = arith.constant 0 : index
    %39 = memref.load %arg0[%c1_13, %c0_14] : memref<4x6xf32, #tpu.memory_space<smem>>
    %40 = vector.broadcast %39 : f32 to vector<8x160xf32>
    %41 = arith.mulf %38, %40 : vector<8x160xf32>
    %42 = vector.extract_strided_slice %0 {offsets = [0, 1], sizes = [8, 160], strides = [1, 1]} : vector<8x256xf32> to vector<8x160xf32>
    %c1_15 = arith.constant 1 : index
    %c1_16 = arith.constant 1 : index
    %43 = memref.load %arg0[%c1_15, %c1_16] : memref<4x6xf32, #tpu.memory_space<smem>>
    %44 = vector.broadcast %43 : f32 to vector<8x160xf32>
    %45 = arith.mulf %42, %44 : vector<8x160xf32>
    %46 = arith.addf %41, %45 : vector<8x160xf32>
    %47 = vector.extract_strided_slice %0 {offsets = [0, 2], sizes = [8, 160], strides = [1, 1]} : vector<8x256xf32> to vector<8x160xf32>
    %c1_17 = arith.constant 1 : index
    %c2_18 = arith.constant 2 : index
    %48 = memref.load %arg0[%c1_17, %c2_18] : memref<4x6xf32, #tpu.memory_space<smem>>
    %49 = vector.broadcast %48 : f32 to vector<8x160xf32>
    %50 = arith.mulf %47, %49 : vector<8x160xf32>
    %51 = arith.addf %46, %50 : vector<8x160xf32>
    %52 = vector.extract_strided_slice %0 {offsets = [0, 3], sizes = [8, 160], strides = [1, 1]} : vector<8x256xf32> to vector<8x160xf32>
    %c1_19 = arith.constant 1 : index
    %c3_20 = arith.constant 3 : index
    %53 = memref.load %arg0[%c1_19, %c3_20] : memref<4x6xf32, #tpu.memory_space<smem>>
    %54 = vector.broadcast %53 : f32 to vector<8x160xf32>
    %55 = arith.mulf %52, %54 : vector<8x160xf32>
    %56 = arith.addf %51, %55 : vector<8x160xf32>
    %57 = vector.extract_strided_slice %0 {offsets = [0, 4], sizes = [8, 160], strides = [1, 1]} : vector<8x256xf32> to vector<8x160xf32>
    %c1_21 = arith.constant 1 : index
    %c4_22 = arith.constant 4 : index
    %58 = memref.load %arg0[%c1_21, %c4_22] : memref<4x6xf32, #tpu.memory_space<smem>>
    %59 = vector.broadcast %58 : f32 to vector<8x160xf32>
    %60 = arith.mulf %57, %59 : vector<8x160xf32>
    %61 = arith.addf %56, %60 : vector<8x160xf32>
    %c1_23 = arith.constant 1 : index
    %c5_24 = arith.constant 5 : index
    %62 = memref.load %arg0[%c1_23, %c5_24] : memref<4x6xf32, #tpu.memory_space<smem>>
    %63 = vector.broadcast %62 : f32 to vector<8x160xf32>
    %64 = arith.addf %61, %63 : vector<8x160xf32>
    %cst_25 = arith.constant 0.000000e+00 : f32
    %65 = vector.broadcast %cst_25 : f32 to vector<8x160xf32>
    %66 = arith.cmpf oge, %64, %65 : vector<8x160xf32>
    %cst_26 = arith.constant 0.00999999977 : f32
    %67 = vector.broadcast %cst_26 : f32 to vector<8x160xf32>
    %68 = arith.mulf %67, %64 : vector<8x160xf32>
    %69 = arith.select %66, %64, %68 : vector<8x160xi1>, vector<8x160xf32>
    %70 = arith.truncf %69 : vector<8x160xf32> to vector<8x160xbf16>
    %c160 = arith.constant 160 : index
    %c0_27 = arith.constant 0 : index
    %71 = vector.load %arg2[%c160, %c0_27] : memref<640x128xbf16, #tpu.memory_space<vmem>>, vector<160x128xbf16>
    %cst_28 = arith.constant dense<0.000000e+00> : vector<8x128xf32>
    %72 = tpu.matmul %70, %71, %cst_28 {dimension_numbers = #tpu.dot_dimension_numbers<[1], [0], [0], [1], [0, 0, 1, 1], [], []>} : vector<8x160xbf16>, vector<160x128xbf16>, vector<8x128xf32> -> vector<8x128xf32>
    %73 = arith.addf %37, %72 : vector<8x128xf32>
    %74 = vector.extract_strided_slice %0 {offsets = [0, 0], sizes = [8, 160], strides = [1, 1]} : vector<8x256xf32> to vector<8x160xf32>
    %c2_29 = arith.constant 2 : index
    %c0_30 = arith.constant 0 : index
    %75 = memref.load %arg0[%c2_29, %c0_30] : memref<4x6xf32, #tpu.memory_space<smem>>
    %76 = vector.broadcast %75 : f32 to vector<8x160xf32>
    %77 = arith.mulf %74, %76 : vector<8x160xf32>
    %78 = vector.extract_strided_slice %0 {offsets = [0, 1], sizes = [8, 160], strides = [1, 1]} : vector<8x256xf32> to vector<8x160xf32>
    %c2_31 = arith.constant 2 : index
    %c1_32 = arith.constant 1 : index
    %79 = memref.load %arg0[%c2_31, %c1_32] : memref<4x6xf32, #tpu.memory_space<smem>>
    %80 = vector.broadcast %79 : f32 to vector<8x160xf32>
    %81 = arith.mulf %78, %80 : vector<8x160xf32>
    %82 = arith.addf %77, %81 : vector<8x160xf32>
    %83 = vector.extract_strided_slice %0 {offsets = [0, 2], sizes = [8, 160], strides = [1, 1]} : vector<8x256xf32> to vector<8x160xf32>
    %c2_33 = arith.constant 2 : index
    %c2_34 = arith.constant 2 : index
    %84 = memref.load %arg0[%c2_33, %c2_34] : memref<4x6xf32, #tpu.memory_space<smem>>
    %85 = vector.broadcast %84 : f32 to vector<8x160xf32>
    %86 = arith.mulf %83, %85 : vector<8x160xf32>
    %87 = arith.addf %82, %86 : vector<8x160xf32>
    %88 = vector.extract_strided_slice %0 {offsets = [0, 3], sizes = [8, 160], strides = [1, 1]} : vector<8x256xf32> to vector<8x160xf32>
    %c2_35 = arith.constant 2 : index
    %c3_36 = arith.constant 3 : index
    %89 = memref.load %arg0[%c2_35, %c3_36] : memref<4x6xf32, #tpu.memory_space<smem>>
    %90 = vector.broadcast %89 : f32 to vector<8x160xf32>
    %91 = arith.mulf %88, %90 : vector<8x160xf32>
    %92 = arith.addf %87, %91 : vector<8x160xf32>
    %93 = vector.extract_strided_slice %0 {offsets = [0, 4], sizes = [8, 160], strides = [1, 1]} : vector<8x256xf32> to vector<8x160xf32>
    %c2_37 = arith.constant 2 : index
    %c4_38 = arith.constant 4 : index
    %94 = memref.load %arg0[%c2_37, %c4_38] : memref<4x6xf32, #tpu.memory_space<smem>>
    %95 = vector.broadcast %94 : f32 to vector<8x160xf32>
    %96 = arith.mulf %93, %95 : vector<8x160xf32>
    %97 = arith.addf %92, %96 : vector<8x160xf32>
    %c2_39 = arith.constant 2 : index
    %c5_40 = arith.constant 5 : index
    %98 = memref.load %arg0[%c2_39, %c5_40] : memref<4x6xf32, #tpu.memory_space<smem>>
    %99 = vector.broadcast %98 : f32 to vector<8x160xf32>
    %100 = arith.addf %97, %99 : vector<8x160xf32>
    %cst_41 = arith.constant 0.000000e+00 : f32
    %101 = vector.broadcast %cst_41 : f32 to vector<8x160xf32>
    %102 = arith.cmpf oge, %100, %101 : vector<8x160xf32>
    %cst_42 = arith.constant 0.00999999977 : f32
    %103 = vector.broadcast %cst_42 : f32 to vector<8x160xf32>
    %104 = arith.mulf %103, %100 : vector<8x160xf32>
    %105 = arith.select %102, %100, %104 : vector<8x160xi1>, vector<8x160xf32>
    %106 = arith.truncf %105 : vector<8x160xf32> to vector<8x160xbf16>
    %c320 = arith.constant 320 : index
    %c0_43 = arith.constant 0 : index
    %107 = vector.load %arg2[%c320, %c0_43] : memref<640x128xbf16, #tpu.memory_space<vmem>>, vector<160x128xbf16>
    %cst_44 = arith.constant dense<0.000000e+00> : vector<8x128xf32>
    %108 = tpu.matmul %106, %107, %cst_44 {dimension_numbers = #tpu.dot_dimension_numbers<[1], [0], [0], [1], [0, 0, 1, 1], [], []>} : vector<8x160xbf16>, vector<160x128xbf16>, vector<8x128xf32> -> vector<8x128xf32>
    %109 = arith.addf %73, %108 : vector<8x128xf32>
    %110 = vector.extract_strided_slice %0 {offsets = [0, 0], sizes = [8, 160], strides = [1, 1]} : vector<8x256xf32> to vector<8x160xf32>
    %c3_45 = arith.constant 3 : index
    %c0_46 = arith.constant 0 : index
    %111 = memref.load %arg0[%c3_45, %c0_46] : memref<4x6xf32, #tpu.memory_space<smem>>
    %112 = vector.broadcast %111 : f32 to vector<8x160xf32>
    %113 = arith.mulf %110, %112 : vector<8x160xf32>
    %114 = vector.extract_strided_slice %0 {offsets = [0, 1], sizes = [8, 160], strides = [1, 1]} : vector<8x256xf32> to vector<8x160xf32>
    %c3_47 = arith.constant 3 : index
    %c1_48 = arith.constant 1 : index
    %115 = memref.load %arg0[%c3_47, %c1_48] : memref<4x6xf32, #tpu.memory_space<smem>>
    %116 = vector.broadcast %115 : f32 to vector<8x160xf32>
    %117 = arith.mulf %114, %116 : vector<8x160xf32>
    %118 = arith.addf %113, %117 : vector<8x160xf32>
    %119 = vector.extract_strided_slice %0 {offsets = [0, 2], sizes = [8, 160], strides = [1, 1]} : vector<8x256xf32> to vector<8x160xf32>
    %c3_49 = arith.constant 3 : index
    %c2_50 = arith.constant 2 : index
    %120 = memref.load %arg0[%c3_49, %c2_50] : memref<4x6xf32, #tpu.memory_space<smem>>
    %121 = vector.broadcast %120 : f32 to vector<8x160xf32>
    %122 = arith.mulf %119, %121 : vector<8x160xf32>
    %123 = arith.addf %118, %122 : vector<8x160xf32>
    %124 = vector.extract_strided_slice %0 {offsets = [0, 3], sizes = [8, 160], strides = [1, 1]} : vector<8x256xf32> to vector<8x160xf32>
    %c3_51 = arith.constant 3 : index
    %c3_52 = arith.constant 3 : index
    %125 = memref.load %arg0[%c3_51, %c3_52] : memref<4x6xf32, #tpu.memory_space<smem>>
    %126 = vector.broadcast %125 : f32 to vector<8x160xf32>
    %127 = arith.mulf %124, %126 : vector<8x160xf32>
    %128 = arith.addf %123, %127 : vector<8x160xf32>
    %129 = vector.extract_strided_slice %0 {offsets = [0, 4], sizes = [8, 160], strides = [1, 1]} : vector<8x256xf32> to vector<8x160xf32>
    %c3_53 = arith.constant 3 : index
    %c4_54 = arith.constant 4 : index
    %130 = memref.load %arg0[%c3_53, %c4_54] : memref<4x6xf32, #tpu.memory_space<smem>>
    %131 = vector.broadcast %130 : f32 to vector<8x160xf32>
    %132 = arith.mulf %129, %131 : vector<8x160xf32>
    %133 = arith.addf %128, %132 : vector<8x160xf32>
    %c3_55 = arith.constant 3 : index
    %c5_56 = arith.constant 5 : index
    %134 = memref.load %arg0[%c3_55, %c5_56] : memref<4x6xf32, #tpu.memory_space<smem>>
    %135 = vector.broadcast %134 : f32 to vector<8x160xf32>
    %136 = arith.addf %133, %135 : vector<8x160xf32>
    %cst_57 = arith.constant 0.000000e+00 : f32
    %137 = vector.broadcast %cst_57 : f32 to vector<8x160xf32>
    %138 = arith.cmpf oge, %136, %137 : vector<8x160xf32>
    %cst_58 = arith.constant 0.00999999977 : f32
    %139 = vector.broadcast %cst_58 : f32 to vector<8x160xf32>
    %140 = arith.mulf %139, %136 : vector<8x160xf32>
    %141 = arith.select %138, %136, %140 : vector<8x160xi1>, vector<8x160xf32>
    %142 = arith.truncf %141 : vector<8x160xf32> to vector<8x160xbf16>
    %c480 = arith.constant 480 : index
    %c0_59 = arith.constant 0 : index
    %143 = vector.load %arg2[%c480, %c0_59] : memref<640x128xbf16, #tpu.memory_space<vmem>>, vector<160x128xbf16>
    %cst_60 = arith.constant dense<0.000000e+00> : vector<8x128xf32>
    %144 = tpu.matmul %142, %143, %cst_60 {dimension_numbers = #tpu.dot_dimension_numbers<[1], [0], [0], [1], [0, 0, 1, 1], [], []>} : vector<8x160xbf16>, vector<160x128xbf16>, vector<8x128xf32> -> vector<8x128xf32>
    %145 = arith.addf %109, %144 : vector<8x128xf32>
    %c0_61 = arith.constant 0 : index
    %c0_62 = arith.constant 0 : index
    %146 = vector.load %arg3[%c0_61, %c0_62] : memref<1x128xf32, #tpu.memory_space<vmem>>, vector<1x128xf32>
    %147 = vector.broadcast %146 : vector<1x128xf32> to vector<8x128xf32>
    %148 = arith.addf %145, %147 : vector<8x128xf32>
    %cst_63 = arith.constant 0.000000e+00 : f32
    %149 = vector.broadcast %cst_63 : f32 to vector<8x128xf32>
    %150 = arith.cmpf oge, %148, %149 : vector<8x128xf32>
    %cst_64 = arith.constant 0.00999999977 : f32
    %151 = vector.broadcast %cst_64 : f32 to vector<8x128xf32>
    %152 = arith.mulf %151, %148 : vector<8x128xf32>
    %153 = arith.select %150, %148, %152 : vector<8x128xi1>, vector<8x128xf32>
    %c0_65 = arith.constant 0 : index
    %c0_66 = arith.constant 0 : index
    %154 = vector.load %arg4[%c0_65, %c0_66] : memref<8x128xf32, #tpu.memory_space<vmem>>, vector<8x128xf32>
    tpu.vector_store %arg4[%c0_65, %c0_66], %153 {strides = array<i32>} : memref<8x128xf32, #tpu.memory_space<vmem>>, vector<8x128xf32>,
    return
  }
}

</mosaic_0001>

<llo_original>
// kernel: convnet_forward.1
$region0: #{convnet_forward.1}
  #allocation0 [shape = 'u32[]', space=smem, size = 0x4, offset = 0x4, fixed_abs, tag = 'smem constant byte address 0x4 - core index']
  #allocation1 [shape = 'u32[144,128]{1,0:T(1,128)}', space=vmem, size = 0x12000, scoped, tag = 'internal scratch']
  %s0 = inlined_call_operand.vmem [shape: f32[4,6], index: 0, kind: input, shape index: {}]
  %s1 = inlined_call_operand.vmem [shape: f32[8,256], index: 1, kind: input, shape index: {}]
  %s2 = inlined_call_operand.hbm [shape: bf16[640,128], index: 2, kind: input, shape index: {}]
  %s3 = inlined_call_operand.vmem [shape: f32[1,128], index: 3, kind: input, shape index: {}]
  %s4 = inlined_call_operand.vmem [shape: f32[8,128], index: 4, kind: output, shape index: {}]
  %s5 = sld [smem:[#allocation0]]
  $region34: #{convnet_forward.1} parent=0
    _
  %s7 = ssub.s32 1, %s5
  %s8 = scalar_select 0, %s7, %s5
  $region1: #{convnet_forward.1} parent=0
    #allocation2 [shape = 'u8[2048]{0}', space=smem, size = 0x800, scoped, tag = 'input window, operand 0, single buffered']
    #allocation3 [shape = 's32[1]{0}', space=sflag, size = 0x4, scoped, tag = 'scoped memory for convnet_forward.1']
    #allocation4 [shape = 's32[1]{0}', space=sflag, size = 0x4, scoped, tag = 'scoped memory for convnet_forward.1']
    #allocation5 [shape = 'u8[163840]{0}', space=vmem, size = 0x28000, scoped, tag = 'input window, operand 2, single buffered']
    %9 = vsyncpa [#allocation4], 0
    %10 = vsyncpa [#allocation3], 0
    // Predicated region
    $region2: #{convnet_forward.1} parent=1 // pred_check
      _
    $region3: #{convnet_forward.1} parent=1 // pred_check_branch
      %12 = sbr.rel (0) target = $region5
    $region4: #{convnet_forward.1} parent=1 // pred_region
      %s14 = ssub.s32 64, 64
      %15 = vsyncadd [#allocation4], %s14
      %s17 = sshll.u32 %s0, 4
      %s18 = int_to_ptr.vmem [resolvable:$true] %s17
      %20 = dma.vmem_to_smem %s18, 64, [#allocation2], [#allocation4]
    $region5: #{convnet_forward.1} parent=1 // pred_fallthru
      _
    // Predicated region
    $region6: #{convnet_forward.1} parent=1 // pred_check
      _
    $region7: #{convnet_forward.1} parent=1 // pred_check_branch
      %22 = sbr.rel (0) target = $region9
    $region8: #{convnet_forward.1} parent=1 // pred_region
      _
    $region9: #{convnet_forward.1} parent=1 // pred_fallthru
      _
    // Predicated region
    $region10: #{convnet_forward.1} parent=1 // pred_check
      _
    $region11: #{convnet_forward.1} parent=1 // pred_check_branch
      %24 = sbr.rel (0) target = $region13
    $region12: #{convnet_forward.1} parent=1 // pred_region
      %s26 = ssub.s32 5120, 5120
      %27 = vsyncadd [#allocation3], %s26
      %s28 = sshll.u32 [#allocation5], 4
      %s29 = int_to_ptr.vmem [resolvable:$true] %s28
      %34 = dma.hbm_to_vmem [thread:$0]  %s2, 5120, %s29, [#allocation3], 64, 64, 4
    $region13: #{convnet_forward.1} parent=1 // pred_fallthru
      _
    // Predicated region
    $region14: #{convnet_forward.1} parent=1 // pred_check
      _
    $region15: #{convnet_forward.1} parent=1 // pred_check_branch
      %36 = sbr.rel (0) target = $region17
    $region16: #{convnet_forward.1} parent=1 // pred_region
      _
    $region17: #{convnet_forward.1} parent=1 // pred_fallthru
      _
    // Predicated region
    $region18: #{convnet_forward.1} parent=1 // pred_check
      _
    $region19: #{convnet_forward.1} parent=1 // pred_check_branch
      %38 = sbr.rel (0) target = $region21
    $region20: #{convnet_forward.1} parent=1 // pred_region
      %39 = dma.done [#allocation4], 64
    $region21: #{convnet_forward.1} parent=1 // pred_fallthru
      _
    // Predicated region
    $region22: #{convnet_forward.1} parent=1 // pred_check
      _
    $region23: #{convnet_forward.1} parent=1 // pred_check_branch
      %41 = sbr.rel (0) target = $region25
    $region24: #{convnet_forward.1} parent=1 // pred_region
      %42 = dma.done [#allocation3], 5120
    $region25: #{convnet_forward.1} parent=1 // pred_fallthru
      _
    %43 = sfence
    %v45 = vld [vmem:[%s1] sm:$0xff]
    %v46 = vld [vmem:[%s1 + $0x8] sm:$0xff]
    %s47 = sld [smem:[#allocation2]]
    %v48 = vstv %s47
    %v49 = vmul.f32 %v45, %v48
    %v50 = vmul.f32 %v46, %v48
    %s51 = sld [smem:[#allocation2 + $0x1]]
    %v52 = vstv %s51
    %v53 = vmul.f32 %v45, %v52
    %v54 = vmul.f32 %v46, %v52
    %57 = vrot.lane.b32.xlu0 %v53, 127
    %v58 = vpop.permute.xlu0 %57
    %59 = vrot.lane.b32.xlu0 %v54, 127
    %v60 = vpop.permute.xlu0 %59
    %vm61 = vcmask 1039360
    %v62 = vsel %vm61, %v58, %v60
    %v65 = vadd.f32 %v49, %v62
    %v66 = vadd.f32 %v50, %v60
    %s67 = sld [smem:[#allocation2 + $0x2]]
    %v68 = vstv %s67
    %v69 = vmul.f32 %v45, %v68
    %v70 = vmul.f32 %v46, %v68
    %73 = vrot.lane.b32.xlu0 %v69, 126
    %v74 = vpop.permute.xlu0 %73
    %75 = vrot.lane.b32.xlu0 %v70, 126
    %v76 = vpop.permute.xlu0 %75
    %vm77 = vcmask 1031168
    %v78 = vsel %vm77, %v74, %v76
    %v81 = vadd.f32 %v65, %v78
    %v82 = vadd.f32 %v66, %v76
    %s83 = sld [smem:[#allocation2 + $0x3]]
    %v84 = vstv %s83
    %v85 = vmul.f32 %v45, %v84
    %v86 = vmul.f32 %v46, %v84
    %89 = vrot.lane.b32.xlu0 %v85, 125
    %v90 = vpop.permute.xlu0 %89
    %91 = vrot.lane.b32.xlu0 %v86, 125
    %v92 = vpop.permute.xlu0 %91
    %vm93 = vcmask 1022976
    %v94 = vsel %vm93, %v90, %v92
    %v97 = vadd.f32 %v81, %v94
    %v98 = vadd.f32 %v82, %v92
    %s99 = sld [smem:[#allocation2 + $0x4]]
    %v100 = vstv %s99
    %v101 = vmul.f32 %v45, %v100
    %v102 = vmul.f32 %v46, %v100
    %105 = vrot.lane.b32.xlu0 %v101, 124
    %v106 = vpop.permute.xlu0 %105
    %107 = vrot.lane.b32.xlu0 %v102, 124
    %v108 = vpop.permute.xlu0 %107
    %vm109 = vcmask 1014784
    %v110 = vsel %vm109, %v106, %v108
    %v113 = vadd.f32 %v97, %v110
    %v114 = vadd.f32 %v98, %v108
    %s115 = sld [smem:[#allocation2 + $0x5]]
    %v116 = vstv %s115
    %v117 = vadd.f32 %v113, %v116
    %v118 = vadd.f32 %v114, %v116
    %vm119 = vcmp.ge.f32.partialorder %v117, 0.0
    %vm120 = vcmp.ge.f32.partialorder %v118, 0.0
    %v121 = vmul.f32 %v117, 0.01
    %v122 = vmul.f32 %v118, 0.01
    %v123 = vsel %vm119, %v117, %v121
    %v124 = vsel %vm120, %v118, %v122
    %v125 = vpack.c.bf16 %v123, %v123
    %v126 = vpack.c.bf16 %v124, %v124
    %v127 = vld [vmem:[#allocation5] sm:$0xf]
    %v128 = vld [vmem:[#allocation5 + $0x4] sm:$0xf]
    %v129 = vld [vmem:[#allocation5 + $0x8] sm:$0xf]
    %v130 = vld [vmem:[#allocation5 + $0xc] sm:$0xf]
    %v131 = vld [vmem:[#allocation5 + $0x10] sm:$0xf]
    %v132 = vld [vmem:[#allocation5 + $0x14] sm:$0xf]
    %v133 = vld [vmem:[#allocation5 + $0x18] sm:$0xf]
    %v134 = vld [vmem:[#allocation5 + $0x1c] sm:$0xf]
    %v135 = vld [vmem:[#allocation5 + $0x20] sm:$0xf]
    %v136 = vld [vmem:[#allocation5 + $0x24] sm:$0xf]
    %v137 = vld [vmem:[#allocation5 + $0x28] sm:$0xf]
    %v138 = vld [vmem:[#allocation5 + $0x2c] sm:$0xf]
    %v139 = vld [vmem:[#allocation5 + $0x30] sm:$0xf]
    %v140 = vld [vmem:[#allocation5 + $0x34] sm:$0xf]
    %v141 = vld [vmem:[#allocation5 + $0x38] sm:$0xf]
    %v142 = vld [vmem:[#allocation5 + $0x3c] sm:$0xf]
    %v143 = vld [vmem:[#allocation5 + $0x40] sm:$0xf]
    %v144 = vld [vmem:[#allocation5 + $0x44] sm:$0xf]
    %v145 = vld [vmem:[#allocation5 + $0x48] sm:$0xf]
    %v146 = vld [vmem:[#allocation5 + $0x4c] sm:$0xf]
    %s147 = sld [smem:[#allocation2 + $0x80]]
    %v148 = vstv %s147
    %v149 = vmul.f32 %v45, %v148
    %v150 = vmul.f32 %v46, %v148
    %s151 = sld [smem:[#allocation2 + $0x81]]
    %v152 = vstv %s151
    %v153 = vmul.f32 %v45, %v152
    %v154 = vmul.f32 %v46, %v152
    %157 = vrot.lane.b32.xlu0 %v153, 127
    %v158 = vpop.permute.xlu0 %157
    %159 = vrot.lane.b32.xlu0 %v154, 127
    %v160 = vpop.permute.xlu0 %159
    %v161 = vsel %vm61, %v158, %v160
    %v164 = vadd.f32 %v149, %v161
    %v165 = vadd.f32 %v150, %v160
    %s166 = sld [smem:[#allocation2 + $0x82]]
    %v167 = vstv %s166
    %v168 = vmul.f32 %v45, %v167
    %v169 = vmul.f32 %v46, %v167
    %172 = vrot.lane.b32.xlu0 %v168, 126
    %v173 = vpop.permute.xlu0 %172
    %174 = vrot.lane.b32.xlu0 %v169, 126
    %v175 = vpop.permute.xlu0 %174
    %v176 = vsel %vm77, %v173, %v175
    %v179 = vadd.f32 %v164, %v176
    %v180 = vadd.f32 %v165, %v175
    %s181 = sld [smem:[#allocation2 + $0x83]]
    %v182 = vstv %s181
    %v183 = vmul.f32 %v45, %v182
    %v184 = vmul.f32 %v46, %v182
    %187 = vrot.lane.b32.xlu0 %v183, 125
    %v188 = vpop.permute.xlu0 %187
    %189 = vrot.lane.b32.xlu0 %v184, 125
    %v190 = vpop.permute.xlu0 %189
    %v191 = vsel %vm93, %v188, %v190
    %v194 = vadd.f32 %v179, %v191
    %v195 = vadd.f32 %v180, %v190
    %s196 = sld [smem:[#allocation2 + $0x84]]
    %v197 = vstv %s196
    %v198 = vmul.f32 %v45, %v197
    %v199 = vmul.f32 %v46, %v197
    %202 = vrot.lane.b32.xlu0 %v198, 124
    %v203 = vpop.permute.xlu0 %202
    %204 = vrot.lane.b32.xlu0 %v199, 124
    %v205 = vpop.permute.xlu0 %204
    %v206 = vsel %vm109, %v203, %v205
    %v209 = vadd.f32 %v194, %v206
    %v210 = vadd.f32 %v195, %v205
    %s211 = sld [smem:[#allocation2 + $0x85]]
    %v212 = vstv %s211
    %v213 = vadd.f32 %v209, %v212
    %v214 = vadd.f32 %v210, %v212
    %vm215 = vcmp.ge.f32.partialorder %v213, 0.0
    %vm216 = vcmp.ge.f32.partialorder %v214, 0.0
    %v217 = vmul.f32 %v213, 0.01
    %v218 = vmul.f32 %v214, 0.01
    %v219 = vsel %vm215, %v213, %v217
    %v220 = vsel %vm216, %v214, %v218
    %v221 = vpack.c.bf16 %v219, %v219
    %v222 = vpack.c.bf16 %v220, %v220
    %v223 = vld [vmem:[#allocation5 + $0x50] sm:$0xf]
    %v224 = vld [vmem:[#allocation5 + $0x54] sm:$0xf]
    %v225 = vld [vmem:[#allocation5 + $0x58] sm:$0xf]
    %v226 = vld [vmem:[#allocation5 + $0x5c] sm:$0xf]
    %v227 = vld [vmem:[#allocation5 + $0x60] sm:$0xf]
    %v228 = vld [vmem:[#allocation5 + $0x64] sm:$0xf]
    %v229 = vld [vmem:[#allocation5 + $0x68] sm:$0xf]
    %v230 = vld [vmem:[#allocation5 + $0x6c] sm:$0xf]
    %v231 = vld [vmem:[#allocation5 + $0x70] sm:$0xf]
    %v232 = vld [vmem:[#allocation5 + $0x74] sm:$0xf]
    %v233 = vld [vmem:[#allocation5 + $0x78] sm:$0xf]
    %v234 = vld [vmem:[#allocation5 + $0x7c] sm:$0xf]
    %v235 = vld [vmem:[#allocation5 + $0x80] sm:$0xf]
    %v236 = vld [vmem:[#allocation5 + $0x84] sm:$0xf]
    %v237 = vld [vmem:[#allocation5 + $0x88] sm:$0xf]
    %v238 = vld [vmem:[#allocation5 + $0x8c] sm:$0xf]
    %v239 = vld [vmem:[#allocation5 + $0x90] sm:$0xf]
    %v240 = vld [vmem:[#allocation5 + $0x94] sm:$0xf]
    %v241 = vld [vmem:[#allocation5 + $0x98] sm:$0xf]
    %v242 = vld [vmem:[#allocation5 + $0x9c] sm:$0xf]
    %v263 = vunpack.c.l.b16 %v223
    %v264 = vunpack.c.l.b16 %v224
    %v265 = vunpack.c.l.b16 %v225
    %v266 = vunpack.c.l.b16 %v226
    %v267 = vunpack.c.l.b16 %v227
    %v268 = vunpack.c.l.b16 %v228
    %v269 = vunpack.c.l.b16 %v229
    %v270 = vunpack.c.l.b16 %v230
    %v271 = vunpack.c.l.b16 %v231
    %v272 = vunpack.c.l.b16 %v232
    %v273 = vunpack.c.l.b16 %v233
    %v274 = vunpack.c.l.b16 %v234
    %v275 = vunpack.c.l.b16 %v235
    %v276 = vunpack.c.l.b16 %v236
    %v277 = vunpack.c.l.b16 %v237
    %v278 = vunpack.c.l.b16 %v238
    %v279 = vunpack.c.l.b16 %v239
    %v280 = vunpack.c.l.b16 %v240
    %v281 = vunpack.c.l.b16 %v241
    %v282 = vunpack.c.l.b16 %v242
    %v283 = vpack.c.b16 %v264, %v263
    %v284 = vpack.c.b16 %v266, %v265
    %v285 = vpack.c.b16 %v268, %v267
    %v286 = vpack.c.b16 %v270, %v269
    %v287 = vpack.c.b16 %v272, %v271
    %v288 = vpack.c.b16 %v274, %v273
    %v289 = vpack.c.b16 %v276, %v275
    %v290 = vpack.c.b16 %v278, %v277
    %v291 = vpack.c.b16 %v280, %v279
    %v292 = vpack.c.b16 %v282, %v281
    %vm303 = vcmask 261120
    %v305 = vsel %vm303, %v222, 0
    %307 = vmatprep.subr.bf16.mxu0 0
    %308 = vmatpush1.bf16.msra.mxu0 %v283
    %309 = vmatprep.subr.bf16.mxu0 0
    %310 = vmatpush1.bf16.msra.mxu0 %v284
    %311 = vmatprep.subr.bf16.mxu0 0
    %312 = vmatpush1.bf16.msra.mxu0 %v285
    %313 = vmatprep.subr.bf16.mxu0 0
    %314 = vmatpush1.bf16.msra.mxu0 %v286
    %315 = vmatprep.subr.bf16.mxu0 0
    %316 = vmatpush1.bf16.msra.mxu0 %v287
    %317 = vmatprep.subr.bf16.mxu0 0
    %318 = vmatpush1.bf16.msra.mxu0 %v288
    %319 = vmatprep.subr.bf16.mxu0 0
    %320 = vmatpush1.bf16.msra.mxu0 %v289
    %321 = vmatprep.subr.bf16.mxu0 0
    %322 = vmatpush1.bf16.msra.mxu0 %v290
    %323 = vmatprep.subr.bf16.mxu0 0
    %324 = vmatpush1.bf16.msra.mxu0 %v291
    %325 = vmatprep.subr.bf16.mxu0 0
    %326 = vmatpush1.bf16.msra.mxu0 %v292
    %327 = vmatprep.subr.bf16.mxu0 0
    %328 = vmatpush1.bf16.msra.mxu0 0
    %329 = vmatprep.subr.bf16.mxu0 0
    %330 = vmatpush1.bf16.msra.mxu0 0
    %331 = vmatprep.subr.bf16.mxu0 0
    %332 = vmatpush1.bf16.msra.mxu0 0
    %333 = vmatprep.subr.bf16.mxu0 0
    %334 = vmatpush1.bf16.msra.mxu0 0
    %335 = vmatprep.subr.bf16.mxu0 0
    %336 = vmatpush1.bf16.msra.mxu0 0
    %337 = vmatprep.subr.bf16.mxu0 0
    %338 = vmatpush1.bf16.msra.mxu0 0
    %339 = vmatprep.mubr.bf16.mxu0 %v305
    %340 = vmatmul.mubr.bf16.gmra.mrb[0].mxu0 %v221
    %v341 = vpop.f32.mrb[0].mxu0
    %v342 = vadd.f32 0.0, %v341
    %v343 = vpop.f32.mrb[0].mxu0
    %v344 = vpop.f32.mrb[0].mxu0
    %v345 = vpop.f32.mrb[0].mxu0
    %346 = vdwg.mxu0
    %v367 = vunpack.c.l.b16 %v127
    %v368 = vunpack.c.l.b16 %v128
    %v369 = vunpack.c.l.b16 %v129
    %v370 = vunpack.c.l.b16 %v130
    %v371 = vunpack.c.l.b16 %v131
    %v372 = vunpack.c.l.b16 %v132
    %v373 = vunpack.c.l.b16 %v133
    %v374 = vunpack.c.l.b16 %v134
    %v375 = vunpack.c.l.b16 %v135
    %v376 = vunpack.c.l.b16 %v136
    %v377 = vunpack.c.l.b16 %v137
    %v378 = vunpack.c.l.b16 %v138
    %v379 = vunpack.c.l.b16 %v139
    %v380 = vunpack.c.l.b16 %v140
    %v381 = vunpack.c.l.b16 %v141
    %v382 = vunpack.c.l.b16 %v142
    %v383 = vunpack.c.l.b16 %v143
    %v384 = vunpack.c.l.b16 %v144
    %v385 = vunpack.c.l.b16 %v145
    %v386 = vunpack.c.l.b16 %v146
    %v387 = vpack.c.b16 %v368, %v367
    %v388 = vpack.c.b16 %v370, %v369
    %v389 = vpack.c.b16 %v372, %v371
    %v390 = vpack.c.b16 %v374, %v373
    %v391 = vpack.c.b16 %v376, %v375
    %v392 = vpack.c.b16 %v378, %v377
    %v393 = vpack.c.b16 %v380, %v379
    %v394 = vpack.c.b16 %v382, %v381
    %v395 = vpack.c.b16 %v384, %v383
    %v396 = vpack.c.b16 %v386, %v385
    %v408 = vsel %vm303, %v126, 0
    %410 = vmatprep.subr.bf16.mxu0 0
    %411 = vmatpush1.bf16.msra.mxu0 %v387
    %412 = vmatprep.subr.bf16.mxu0 0
    %413 = vmatpush1.bf16.msra.mxu0 %v388
    %414 = vmatprep.subr.bf16.mxu0 0
    %415 = vmatpush1.bf16.msra.mxu0 %v389
    %416 = vmatprep.subr.bf16.mxu0 0
    %417 = vmatpush1.bf16.msra.mxu0 %v390
    %418 = vmatprep.subr.bf16.mxu0 0
    %419 = vmatpush1.bf16.msra.mxu0 %v391
    %420 = vmatprep.subr.bf16.mxu0 0
    %421 = vmatpush1.bf16.msra.mxu0 %v392
    %422 = vmatprep.subr.bf16.mxu0 0
    %423 = vmatpush1.bf16.msra.mxu0 %v393
    %424 = vmatprep.subr.bf16.mxu0 0
    %425 = vmatpush1.bf16.msra.mxu0 %v394
    %426 = vmatprep.subr.bf16.mxu0 0
    %427 = vmatpush1.bf16.msra.mxu0 %v395
    %428 = vmatprep.subr.bf16.mxu0 0
    %429 = vmatpush1.bf16.msra.mxu0 %v396
    %430 = vmatprep.subr.bf16.mxu0 0
    %431 = vmatpush1.bf16.msra.mxu0 0
    %432 = vmatprep.subr.bf16.mxu0 0
    %433 = vmatpush1.bf16.msra.mxu0 0
    %434 = vmatprep.subr.bf16.mxu0 0
    %435 = vmatpush1.bf16.msra.mxu0 0
    %436 = vmatprep.subr.bf16.mxu0 0
    %437 = vmatpush1.bf16.msra.mxu0 0
    %438 = vmatprep.subr.bf16.mxu0 0
    %439 = vmatpush1.bf16.msra.mxu0 0
    %440 = vmatprep.subr.bf16.mxu0 0
    %441 = vmatpush1.bf16.msra.mxu0 0
    %442 = vmatprep.mubr.bf16.mxu0 %v408
    %443 = vmatmul.mubr.bf16.gmra.mrb[0].mxu0 %v125
    %v444 = vpop.f32.mrb[0].mxu0
    %v445 = vadd.f32 %v342, %v444
    %v446 = vpop.f32.mrb[0].mxu0
    %v447 = vpop.f32.mrb[0].mxu0
    %v448 = vpop.f32.mrb[0].mxu0
    %449 = vdwg.mxu0
    %s450 = sld [smem:[#allocation2 + $0x100]]
    %v451 = vstv %s450
    %v452 = vmul.f32 %v45, %v451
    %v453 = vmul.f32 %v46, %v451
    %s454 = sld [smem:[#allocation2 + $0x101]]
    %v455 = vstv %s454
    %v456 = vmul.f32 %v45, %v455
    %v457 = vmul.f32 %v46, %v455
    %460 = vrot.lane.b32.xlu0 %v456, 127
    %v461 = vpop.permute.xlu0 %460
    %462 = vrot.lane.b32.xlu0 %v457, 127
    %v463 = vpop.permute.xlu0 %462
    %v464 = vsel %vm61, %v461, %v463
    %v467 = vadd.f32 %v452, %v464
    %v468 = vadd.f32 %v453, %v463
    %s469 = sld [smem:[#allocation2 + $0x102]]
    %v470 = vstv %s469
    %v471 = vmul.f32 %v45, %v470
    %v472 = vmul.f32 %v46, %v470
    %475 = vrot.lane.b32.xlu0 %v471, 126
    %v476 = vpop.permute.xlu0 %475
    %477 = vrot.lane.b32.xlu0 %v472, 126
    %v478 = vpop.permute.xlu0 %477
    %v479 = vsel %vm77, %v476, %v478
    %v482 = vadd.f32 %v467, %v479
    %v483 = vadd.f32 %v468, %v478
    %s484 = sld [smem:[#allocation2 + $0x103]]
    %v485 = vstv %s484
    %v486 = vmul.f32 %v45, %v485
    %v487 = vmul.f32 %v46, %v485
    %490 = vrot.lane.b32.xlu0 %v486, 125
    %v491 = vpop.permute.xlu0 %490
    %492 = vrot.lane.b32.xlu0 %v487, 125
    %v493 = vpop.permute.xlu0 %492
    %v494 = vsel %vm93, %v491, %v493
    %v497 = vadd.f32 %v482, %v494
    %v498 = vadd.f32 %v483, %v493
    %s499 = sld [smem:[#allocation2 + $0x104]]
    %v500 = vstv %s499
    %v501 = vmul.f32 %v45, %v500
    %v502 = vmul.f32 %v46, %v500
    %505 = vrot.lane.b32.xlu0 %v501, 124
    %v506 = vpop.permute.xlu0 %505
    %507 = vrot.lane.b32.xlu0 %v502, 124
    %v508 = vpop.permute.xlu0 %507
    %v509 = vsel %vm109, %v506, %v508
    %v512 = vadd.f32 %v497, %v509
    %v513 = vadd.f32 %v498, %v508
    %s514 = sld [smem:[#allocation2 + $0x105]]
    %v515 = vstv %s514
    %v516 = vadd.f32 %v512, %v515
    %v517 = vadd.f32 %v513, %v515
    %vm518 = vcmp.ge.f32.partialorder %v516, 0.0
    %vm519 = vcmp.ge.f32.partialorder %v517, 0.0
    %v520 = vmul.f32 %v516, 0.01
    %v521 = vmul.f32 %v517, 0.01
    %v522 = vsel %vm518, %v516, %v520
    %v523 = vsel %vm519, %v517, %v521
    %v524 = vpack.c.bf16 %v522, %v522
    %v525 = vpack.c.bf16 %v523, %v523
    %v526 = vld [vmem:[#allocation5 + $0xa0] sm:$0xf]
    %v527 = vld [vmem:[#allocation5 + $0xa4] sm:$0xf]
    %v528 = vld [vmem:[#allocation5 + $0xa8] sm:$0xf]
    %v529 = vld [vmem:[#allocation5 + $0xac] sm:$0xf]
    %v530 = vld [vmem:[#allocation5 + $0xb0] sm:$0xf]
    %v531 = vld [vmem:[#allocation5 + $0xb4] sm:$0xf]
    %v532 = vld [vmem:[#allocation5 + $0xb8] sm:$0xf]
    %v533 = vld [vmem:[#allocation5 + $0xbc] sm:$0xf]
    %v534 = vld [vmem:[#allocation5 + $0xc0] sm:$0xf]
    %v535 = vld [vmem:[#allocation5 + $0xc4] sm:$0xf]
    %v536 = vld [vmem:[#allocation5 + $0xc8] sm:$0xf]
    %v537 = vld [vmem:[#allocation5 + $0xcc] sm:$0xf]
    %v538 = vld [vmem:[#allocation5 + $0xd0] sm:$0xf]
    %v539 = vld [vmem:[#allocation5 + $0xd4] sm:$0xf]
    %v540 = vld [vmem:[#allocation5 + $0xd8] sm:$0xf]
    %v541 = vld [vmem:[#allocation5 + $0xdc] sm:$0xf]
    %v542 = vld [vmem:[#allocation5 + $0xe0] sm:$0xf]
    %v543 = vld [vmem:[#allocation5 + $0xe4] sm:$0xf]
    %v544 = vld [vmem:[#allocation5 + $0xe8] sm:$0xf]
    %v545 = vld [vmem:[#allocation5 + $0xec] sm:$0xf]
    %v566 = vunpack.c.l.b16 %v526
    %v567 = vunpack.c.l.b16 %v527
    %v568 = vunpack.c.l.b16 %v528
    %v569 = vunpack.c.l.b16 %v529
    %v570 = vunpack.c.l.b16 %v530
    %v571 = vunpack.c.l.b16 %v531
    %v572 = vunpack.c.l.b16 %v532
    %v573 = vunpack.c.l.b16 %v533
    %v574 = vunpack.c.l.b16 %v534
    %v575 = vunpack.c.l.b16 %v535
    %v576 = vunpack.c.l.b16 %v536
    %v577 = vunpack.c.l.b16 %v537
    %v578 = vunpack.c.l.b16 %v538
    %v579 = vunpack.c.l.b16 %v539
    %v580 = vunpack.c.l.b16 %v540
    %v581 = vunpack.c.l.b16 %v541
    %v582 = vunpack.c.l.b16 %v542
    %v583 = vunpack.c.l.b16 %v543
    %v584 = vunpack.c.l.b16 %v544
    %v585 = vunpack.c.l.b16 %v545
    %v586 = vpack.c.b16 %v567, %v566
    %v587 = vpack.c.b16 %v569, %v568
    %v588 = vpack.c.b16 %v571, %v570
    %v589 = vpack.c.b16 %v573, %v572
    %v590 = vpack.c.b16 %v575, %v574
    %v591 = vpack.c.b16 %v577, %v576
    %v592 = vpack.c.b16 %v579, %v578
    %v593 = vpack.c.b16 %v581, %v580
    %v594 = vpack.c.b16 %v583, %v582
    %v595 = vpack.c.b16 %v585, %v584
    %v607 = vsel %vm303, %v525, 0
    %609 = vmatprep.subr.bf16.mxu0 0
    %610 = vmatpush1.bf16.msra.mxu0 %v586
    %611 = vmatprep.subr.bf16.mxu0 0
    %612 = vmatpush1.bf16.msra.mxu0 %v587
    %613 = vmatprep.subr.bf16.mxu0 0
    %614 = vmatpush1.bf16.msra.mxu0 %v588
    %615 = vmatprep.subr.bf16.mxu0 0
    %616 = vmatpush1.bf16.msra.mxu0 %v589
    %617 = vmatprep.subr.bf16.mxu0 0
    %618 = vmatpush1.bf16.msra.mxu0 %v590
    %619 = vmatprep.subr.bf16.mxu0 0
    %620 = vmatpush1.bf16.msra.mxu0 %v591
    %621 = vmatprep.subr.bf16.mxu0 0
    %622 = vmatpush1.bf16.msra.mxu0 %v592
    %623 = vmatprep.subr.bf16.mxu0 0
    %624 = vmatpush1.bf16.msra.mxu0 %v593
    %625 = vmatprep.subr.bf16.mxu0 0
    %626 = vmatpush1.bf16.msra.mxu0 %v594
    %627 = vmatprep.subr.bf16.mxu0 0
    %628 = vmatpush1.bf16.msra.mxu0 %v595
    %629 = vmatprep.subr.bf16.mxu0 0
    %630 = vmatpush1.bf16.msra.mxu0 0
    %631 = vmatprep.subr.bf16.mxu0 0
    %632 = vmatpush1.bf16.msra.mxu0 0
    %633 = vmatprep.subr.bf16.mxu0 0
    %634 = vmatpush1.bf16.msra.mxu0 0
    %635 = vmatprep.subr.bf16.mxu0 0
    %636 = vmatpush1.bf16.msra.mxu0 0
    %637 = vmatprep.subr.bf16.mxu0 0
    %638 = vmatpush1.bf16.msra.mxu0 0
    %639 = vmatprep.subr.bf16.mxu0 0
    %640 = vmatpush1.bf16.msra.mxu0 0
    %641 = vmatprep.mubr.bf16.mxu0 %v607
    %642 = vmatmul.mubr.bf16.gmra.mrb[0].mxu0 %v524
    %v643 = vpop.f32.mrb[0].mxu0
    %v644 = vadd.f32 0.0, %v643
    %v645 = vpop.f32.mrb[0].mxu0
    %v646 = vpop.f32.mrb[0].mxu0
    %v647 = vpop.f32.mrb[0].mxu0
    %648 = vdwg.mxu0
    %v649 = vadd.f32 %v445, %v644
    %s650 = sld [smem:[#allocation2 + $0x180]]
    %v651 = vstv %s650
    %v652 = vmul.f32 %v45, %v651
    %v653 = vmul.f32 %v46, %v651
    %s654 = sld [smem:[#allocation2 + $0x181]]
    %v655 = vstv %s654
    %v656 = vmul.f32 %v45, %v655
    %v657 = vmul.f32 %v46, %v655
    %660 = vrot.lane.b32.xlu0 %v656, 127
    %v661 = vpop.permute.xlu0 %660
    %662 = vrot.lane.b32.xlu0 %v657, 127
    %v663 = vpop.permute.xlu0 %662
    %v664 = vsel %vm61, %v661, %v663
    %v667 = vadd.f32 %v652, %v664
    %v668 = vadd.f32 %v653, %v663
    %s669 = sld [smem:[#allocation2 + $0x182]]
    %v670 = vstv %s669
    %v671 = vmul.f32 %v45, %v670
    %v672 = vmul.f32 %v46, %v670
    %675 = vrot.lane.b32.xlu0 %v671, 126
    %v676 = vpop.permute.xlu0 %675
    %677 = vrot.lane.b32.xlu0 %v672, 126
    %v678 = vpop.permute.xlu0 %677
    %v679 = vsel %vm77, %v676, %v678
    %v682 = vadd.f32 %v667, %v679
    %v683 = vadd.f32 %v668, %v678
    %s684 = sld [smem:[#allocation2 + $0x183]]
    %v685 = vstv %s684
    %v686 = vmul.f32 %v45, %v685
    %v687 = vmul.f32 %v46, %v685
    %690 = vrot.lane.b32.xlu0 %v686, 125
    %v691 = vpop.permute.xlu0 %690
    %692 = vrot.lane.b32.xlu0 %v687, 125
    %v693 = vpop.permute.xlu0 %692
    %v694 = vsel %vm93, %v691, %v693
    %v697 = vadd.f32 %v682, %v694
    %v698 = vadd.f32 %v683, %v693
    %s699 = sld [smem:[#allocation2 + $0x184]]
    %v700 = vstv %s699
    %v701 = vmul.f32 %v45, %v700
    %v702 = vmul.f32 %v46, %v700
    %705 = vrot.lane.b32.xlu0 %v701, 124
    %v706 = vpop.permute.xlu0 %705
    %707 = vrot.lane.b32.xlu0 %v702, 124
    %v708 = vpop.permute.xlu0 %707
    %v709 = vsel %vm109, %v706, %v708
    %v712 = vadd.f32 %v697, %v709
    %v713 = vadd.f32 %v698, %v708
    %s714 = sld [smem:[#allocation2 + $0x185]]
    %v715 = vstv %s714
    %v716 = vadd.f32 %v712, %v715
    %v717 = vadd.f32 %v713, %v715
    %vm718 = vcmp.ge.f32.partialorder %v716, 0.0
    %vm719 = vcmp.ge.f32.partialorder %v717, 0.0
    %v720 = vmul.f32 %v716, 0.01
    %v721 = vmul.f32 %v717, 0.01
    %v722 = vsel %vm718, %v716, %v720
    %v723 = vsel %vm719, %v717, %v721
    %v724 = vpack.c.bf16 %v722, %v722
    %v725 = vpack.c.bf16 %v723, %v723
    %v726 = vld [vmem:[#allocation5 + $0xf0] sm:$0xf]
    %v727 = vld [vmem:[#allocation5 + $0xf4] sm:$0xf]
    %v728 = vld [vmem:[#allocation5 + $0xf8] sm:$0xf]
    %v729 = vld [vmem:[#allocation5 + $0xfc] sm:$0xf]
    %v730 = vld [vmem:[#allocation5 + $0x100] sm:$0xf]
    %v731 = vld [vmem:[#allocation5 + $0x104] sm:$0xf]
    %v732 = vld [vmem:[#allocation5 + $0x108] sm:$0xf]
    %v733 = vld [vmem:[#allocation5 + $0x10c] sm:$0xf]
    %v734 = vld [vmem:[#allocation5 + $0x110] sm:$0xf]
    %v735 = vld [vmem:[#allocation5 + $0x114] sm:$0xf]
    %v736 = vld [vmem:[#allocation5 + $0x118] sm:$0xf]
    %v737 = vld [vmem:[#allocation5 + $0x11c] sm:$0xf]
    %v738 = vld [vmem:[#allocation5 + $0x120] sm:$0xf]
    %v739 = vld [vmem:[#allocation5 + $0x124] sm:$0xf]
    %v740 = vld [vmem:[#allocation5 + $0x128] sm:$0xf]
    %v741 = vld [vmem:[#allocation5 + $0x12c] sm:$0xf]
    %v742 = vld [vmem:[#allocation5 + $0x130] sm:$0xf]
    %v743 = vld [vmem:[#allocation5 + $0x134] sm:$0xf]
    %v744 = vld [vmem:[#allocation5 + $0x138] sm:$0xf]
    %v745 = vld [vmem:[#allocation5 + $0x13c] sm:$0xf]
    %v766 = vunpack.c.l.b16 %v726
    %v767 = vunpack.c.l.b16 %v727
    %v768 = vunpack.c.l.b16 %v728
    %v769 = vunpack.c.l.b16 %v729
    %v770 = vunpack.c.l.b16 %v730
    %v771 = vunpack.c.l.b16 %v731
    %v772 = vunpack.c.l.b16 %v732
    %v773 = vunpack.c.l.b16 %v733
    %v774 = vunpack.c.l.b16 %v734
    %v775 = vunpack.c.l.b16 %v735
    %v776 = vunpack.c.l.b16 %v736
    %v777 = vunpack.c.l.b16 %v737
    %v778 = vunpack.c.l.b16 %v738
    %v779 = vunpack.c.l.b16 %v739
    %v780 = vunpack.c.l.b16 %v740
    %v781 = vunpack.c.l.b16 %v741
    %v782 = vunpack.c.l.b16 %v742
    %v783 = vunpack.c.l.b16 %v743
    %v784 = vunpack.c.l.b16 %v744
    %v785 = vunpack.c.l.b16 %v745
    %v786 = vpack.c.b16 %v767, %v766
    %v787 = vpack.c.b16 %v769, %v768
    %v788 = vpack.c.b16 %v771, %v770
    %v789 = vpack.c.b16 %v773, %v772
    %v790 = vpack.c.b16 %v775, %v774
    %v791 = vpack.c.b16 %v777, %v776
    %v792 = vpack.c.b16 %v779, %v778
    %v793 = vpack.c.b16 %v781, %v780
    %v794 = vpack.c.b16 %v783, %v782
    %v795 = vpack.c.b16 %v785, %v784
    %v807 = vsel %vm303, %v725, 0
    %809 = vmatprep.subr.bf16.mxu0 0
    %810 = vmatpush1.bf16.msra.mxu0 %v786
    %811 = vmatprep.subr.bf16.mxu0 0
    %812 = vmatpush1.bf16.msra.mxu0 %v787
    %813 = vmatprep.subr.bf16.mxu0 0
    %814 = vmatpush1.bf16.msra.mxu0 %v788
    %815 = vmatprep.subr.bf16.mxu0 0
    %816 = vmatpush1.bf16.msra.mxu0 %v789
    %817 = vmatprep.subr.bf16.mxu0 0
    %818 = vmatpush1.bf16.msra.mxu0 %v790
    %819 = vmatprep.subr.bf16.mxu0 0
    %820 = vmatpush1.bf16.msra.mxu0 %v791
    %821 = vmatprep.subr.bf16.mxu0 0
    %822 = vmatpush1.bf16.msra.mxu0 %v792
    %823 = vmatprep.subr.bf16.mxu0 0
    %824 = vmatpush1.bf16.msra.mxu0 %v793
    %825 = vmatprep.subr.bf16.mxu0 0
    %826 = vmatpush1.bf16.msra.mxu0 %v794
    %827 = vmatprep.subr.bf16.mxu0 0
    %828 = vmatpush1.bf16.msra.mxu0 %v795
    %829 = vmatprep.subr.bf16.mxu0 0
    %830 = vmatpush1.bf16.msra.mxu0 0
    %831 = vmatprep.subr.bf16.mxu0 0
    %832 = vmatpush1.bf16.msra.mxu0 0
    %833 = vmatprep.subr.bf16.mxu0 0
    %834 = vmatpush1.bf16.msra.mxu0 0
    %835 = vmatprep.subr.bf16.mxu0 0
    %836 = vmatpush1.bf16.msra.mxu0 0
    %837 = vmatprep.subr.bf16.mxu0 0
    %838 = vmatpush1.bf16.msra.mxu0 0
    %839 = vmatprep.subr.bf16.mxu0 0
    %840 = vmatpush1.bf16.msra.mxu0 0
    %841 = vmatprep.mubr.bf16.mxu0 %v807
    %842 = vmatmul.mubr.bf16.gmra.mrb[0].mxu0 %v724
    %v843 = vpop.f32.mrb[0].mxu0
    %v844 = vadd.f32 0.0, %v843
    %v845 = vpop.f32.mrb[0].mxu0
    %v846 = vpop.f32.mrb[0].mxu0
    %v847 = vpop.f32.mrb[0].mxu0
    %848 = vdwg.mxu0
    %v849 = vadd.f32 %v649, %v844
    %v850 = vld [vmem:[%s3] sm:$0x1]
    %v852 = vlaneseq
    %v853 = vshrl.u32 %v852, 7
    %v854 = vsub.s32 0, %v853
    %v855 = vrot.slane %v850, %v854
    %v857 = vadd.f32 %v849, %v855
    %vm858 = vcmp.ge.f32.partialorder %v857, 0.0
    %v859 = vmul.f32 %v857, 0.01
    %v860 = vsel %vm858, %v857, %v859
    %861 = vst [vmem:[%s4] sm:$0xff] %v860
    // Predicated region
    $region26: #{convnet_forward.1} parent=1 // pred_check
      _
    $region27: #{convnet_forward.1} parent=1 // pred_check_branch
      %863 = sbr.rel (0) target = $region29
    $region28: #{convnet_forward.1} parent=1 // pred_region
      _
    $region29: #{convnet_forward.1} parent=1 // pred_fallthru
      _
    // Predicated region
    $region30: #{convnet_forward.1} parent=1 // pred_check
      _
    $region31: #{convnet_forward.1} parent=1 // pred_check_branch
      %865 = sbr.rel (0) target = $region33
    $region32: #{convnet_forward.1} parent=1 // pred_region
      _
    $region33: #{convnet_forward.1} parent=1 // pred_fallthru
      _
    %866 = vsyncpa [#allocation3], 1
    %867 = vsyncpa [#allocation4], 1

</llo_original>
